<compile_context>
chip_gen: v7x
topology: tpu7x:2x2x1
jax: 0.10.0
libtpu: 0.0.40
codegen_flags: <defaults>
</compile_context>

<pallas_src>
import functools

import jax
import jax.numpy as jnp
from jax import lax
from jax.experimental import pallas as pl
from jax.experimental.pallas import tpu as pltpu

MARGIN = 1.0
EPS = 1e-6            # F.pairwise_distance default eps (added to the difference)
MAX_TILE = 256        # symmetric (T, D) row tiles; safe on v7x's 64 MiB VMEM
_PAD_SENTINEL = 1e12  # written into padded row stats -> dist huge -> hinge = 0


def _contrastive_kernel(a_ref, b_ref, rowa_ref, rowb_ref, out_ref, acc_ref,
                        *, tile, n_valid, masked):
    i = pl.program_id(0)
    j = pl.program_id(1)
    nj = pl.num_programs(1)

    @pl.when(j == 0)
    def _init():
        acc_ref[...] = jnp.zeros_like(acc_ref)

    a = a_ref[...]                        # (T, D) native dtype
    b = b_ref[...]                        # (T, D)

    # Off-diagonal term via the expansion ||a_i - b_j + eps||^2
    #   = row_a_i + row_b_j - 2 * a_i . b_j     (row stats precomputed, f32)
    # MXU runs natively in bf16 on v5e/v6e/v7x; accumulate in f32.
    dot = lax.dot_general(a.astype(jnp.bfloat16), b.astype(jnp.bfloat16),
                          (((1,), (1,)), ((), ())),
                          preferred_element_type=jnp.float32)        # (T, T)

    sqdist = jnp.maximum(rowa_ref[...] + rowb_ref[...] - 2.0 * dot, 0.0)
    dist = jnp.sqrt(sqdist)                                          # EUP
    neg = jnp.square(jnp.maximum(MARGIN - dist, 0.0))                # (T, T)
    # Padded rows/cols already contribute exactly 0 here thanks to the
    # sentinel row stats — no per-step (T,T) masking needed.

    @pl.when(i != j)
    def _off_diag_tile():
        acc_ref[...] += neg               # pure VPU add; reduced once at finalize

    @pl.when(i == j)
    def _diag_tile():
        # Positive pairs: exact f32 row-wise reduce (no cancellation). Only the
        # O(N/T) diagonal tiles pay for the f32 upcast.
        af = a.astype(jnp.float32)
        bf = b.astype(jnp.float32)
        diff = af - bf + EPS
        pos_row = jnp.sum(diff * diff, axis=1, keepdims=True)        # (T, 1)
        if masked:                        # static: only traced when N was padded
            rg = i * tile + lax.broadcasted_iota(jnp.int32, (tile, 1), 0)
            pos_row = jnp.where(rg < n_valid, pos_row, 0.0)
        ri = lax.broadcasted_iota(jnp.int32, (tile, tile), 0)
        cj = lax.broadcasted_iota(jnp.int32, (tile, tile), 1)
        # Diagonal entries carry the positive term, off-diagonal keep the hinge.
        acc_ref[...] += jnp.where(ri == cj, pos_row, neg)

    @pl.when(j == nj - 1)
    def _finalize():
        # One cross-lane reduce per i-sweep; lane-dense (8,128) broadcast store.
        out_ref[0] = jnp.zeros((8, 128), jnp.float32) + jnp.sum(acc_ref[...])


def _pick_tile(n: int) -> int:
    """Row-tile size. Tiny N: one sublane-aligned tile. Otherwise: a multiple
    of 128 (lane/MXU-aligned) minimizing padding, preferring >= 2 i-tiles so
    the 'parallel' i axis can be split across v7x's two TensorCores."""
    if n <= 128:
        return -(-n // 8) * 8
    best = None
    for t in range(128, MAX_TILE + 1, 128):
        g = -(-n // t)
        pad = g * t - n
        key = (pad, 0 if g >= 2 else 1, -t)
        if best is None or key < best[0]:
            best = (key, t)
    return best[1]


def contrastive_loss(embeddings: jax.Array) -> jax.Array:
    """embeddings: (2N, D). Returns scalar float32 loss (Identity projector)."""
    two_n, d = embeddings.shape
    assert two_n % 2 == 0, "embeddings batch must be even (first/second half pairing)"
    n = two_n // 2

    t = _pick_tile(n)
    g = -(-n // t)
    n_pad = g * t
    pad = n_pad - n
    masked = pad > 0

    # Precompute the per-row statistics once (they depend only on i or only on
    # j, but were previously recomputed at every grid step):
    #   row_a_i = ||a_i||^2 + 2*eps*sum(a_i) + D*eps^2/2
    #   row_b_j = ||b_j||^2 - 2*eps*sum(b_j) + D*eps^2/2
    ef = embeddings.astype(jnp.float32)
    af, bf = ef[:n], ef[n:]
    half_eps2 = jnp.float32(0.5 * d * EPS * EPS)
    row_a = jnp.sum(af * af, axis=1) + (2.0 * EPS) * jnp.sum(af, axis=1) + half_eps2
    row_b = jnp.sum(bf * bf, axis=1) - (2.0 * EPS) * jnp.sum(bf, axis=1) + half_eps2
    if masked:
        big = jnp.full((pad,), _PAD_SENTINEL, jnp.float32)
        row_a = jnp.concatenate([row_a, big])
        row_b = jnp.concatenate([row_b, big])
    row_a = row_a.reshape(n_pad, 1)     # broadcasts down tile rows
    row_b = row_b.reshape(1, n_pad)     # broadcasts across tile columns

    if masked:
        # Ragged N: pad A/B up to the tile multiple (zeros; their hinge terms
        # are killed by the sentinel row stats, their positives by the mask).
        a_in = jnp.pad(embeddings[:n], ((0, pad), (0, 0)))
        b_in = jnp.pad(embeddings[n:], ((0, pad), (0, 0)))
        a_spec = pl.BlockSpec((t, d), lambda i, j: (i, 0))
        b_spec = pl.BlockSpec((t, d), lambda i, j: (j, 0))
    else:
        # N is a tile multiple: feed `embeddings` directly (no slice/pad copy);
        # B's rows start at block index n // t.
        b_off = n // t
        a_in = embeddings
        b_in = embeddings
        a_spec = pl.BlockSpec((t, d), lambda i, j: (i, 0))
        b_spec = pl.BlockSpec((t, d), lambda i, j: (b_off + j, 0))

    kernel = functools.partial(_contrastive_kernel, tile=t, n_valid=n, masked=masked)

    partials = pl.pallas_call(
        kernel,
        out_shape=jax.ShapeDtypeStruct((g, 8, 128), jnp.float32),
        grid_spec=pltpu.PrefetchScalarGridSpec(
            num_scalar_prefetch=0,
            grid=(g, g),                                   # (i-tile, j-tile)
            in_specs=[
                a_spec,                                    # A row tile
                b_spec,                                    # B row tile
                pl.BlockSpec((t, 1), lambda i, j: (i, 0)),  # row_a column
                pl.BlockSpec((1, t), lambda i, j: (0, j)),  # row_b row
            ],
            out_specs=pl.BlockSpec((1, 8, 128), lambda i, j: (i, 0, 0)),
            scratch_shapes=[pltpu.VMEM((t, t), jnp.float32)],
        ),
        compiler_params=pltpu.CompilerParams(
            dimension_semantics=("parallel", "arbitrary"),
            vmem_limit_bytes=48 * 1024 * 1024,             # < v7x 64 MiB ceiling
        ),
    )(a_in, b_in, row_a, row_b)

    # Each (8,128) output block holds the i-tile partial sum broadcast; reduce.
    return jnp.sum(partials[:, 0, 0])


def _reference_loss(embeddings: jnp.ndarray) -> jnp.ndarray:
    # Pure-JAX reference mirroring the PyTorch forward.
    n = embeddings.shape[0] // 2
    a = embeddings[:n].astype(jnp.float32)
    b = embeddings[n:].astype(jnp.float32)
    diff = a[:, None, :] - b[None, :, :] + EPS            # (N, N, D)
    dist = jnp.sqrt(jnp.sum(diff * diff, axis=-1))        # (N, N)
    eye = jnp.eye(n, dtype=bool)
    pos = jnp.sum(jnp.where(eye, dist * dist, 0.0))
    neg = jnp.sum(jnp.where(eye, 0.0, jnp.square(jnp.maximum(MARGIN - dist, 0.0))))
    return pos + neg


if __name__ == "__main__":
    key = jax.random.PRNGKey(0)
    k1, k2, k3 = jax.random.split(key, 3)

    # Scale 0.1 keeps pairwise distances below margin=1 so the hinge (negative)
    # term is nonzero; otherwise random data makes it trivially zero.
    cases = [
        0.1 * jax.random.normal(k1, (8, 32), dtype=jnp.float32),    # N=4: padded single tile
        0.1 * jax.random.normal(k2, (16, 32), dtype=jnp.float32),   # N=8: unpadded, direct feed
        0.1 * jax.random.normal(k3, (260, 32), dtype=jnp.float32),  # N=130: masked multi-tile grid
    ]
    for emb in cases:
        loss = contrastive_loss(emb)
        jax.block_until_ready(loss)
        ref = _reference_loss(emb)
        # bf16 MXU operands (f32 accumulation) -> loosened but tight tolerance.
        assert jnp.allclose(loss, ref, rtol=2e-2, atol=1e-3), (emb.shape, loss, ref)

    print("KERNEL_OK")
</pallas_src>

<mosaic_0001>
module attributes {stable_mosaic.version = 11 : i64} {
  func.func @_contrastive_kernel(%arg0: i32, %arg1: i32, %arg2: memref<8x32xf32, #tpu.memory_space<vmem>>, %arg3: memref<8x32xf32, #tpu.memory_space<vmem>>, %arg4: memref<8x1xf32, #tpu.memory_space<vmem>>, %arg5: memref<1x8xf32, #tpu.memory_space<vmem>>, %arg6: memref<1x8x128xf32, #tpu.memory_space<vmem>>, %arg7: memref<8x8xf32, #tpu.memory_space<vmem>>) attributes {dimension_semantics = [#tpu.dimension_semantics<parallel>, #tpu.dimension_semantics<arbitrary>], iteration_bounds = array<i64: 1, 1>, scalar_prefetch = 0 : i64, scratch_operands = 1 : i64, tpu.core_type = #tpu.core_type<tc>, window_params = [{transform_indices = @transform_0, window_bounds = array<i64: 8, 32>}, {transform_indices = @transform_1, window_bounds = array<i64: 8, 32>}, {transform_indices = @transform_2, window_bounds = array<i64: 8, 1>}, {transform_indices = @transform_3, window_bounds = array<i64: 1, 8>}, {transform_indices = @transform_4, window_bounds = array<i64: 1, 8, 128>}]} {
    %c0_i32 = arith.constant 0 : i32
    %0 = arith.cmpi eq, %arg1, %c0_i32 : i32
    %1 = arith.extui %0 : i1 to i32
    %c0_i32_0 = arith.constant 0 : i32
    %2 = arith.cmpi ne, %1, %c0_i32_0 : i32
    scf.if %2 {
      %cst_16 = arith.constant 0.000000e+00 : f32
      %33 = vector.broadcast %cst_16 : f32 to vector<8x8xf32>
      %c0_17 = arith.constant 0 : index
      %c0_18 = arith.constant 0 : index
      %34 = vector.load %arg7[%c0_17, %c0_18] : memref<8x8xf32, #tpu.memory_space<vmem>>, vector<8x8xf32>
      tpu.vector_store %arg7[%c0_17, %c0_18], %33 {strides = array<i32>} : memref<8x8xf32, #tpu.memory_space<vmem>>, vector<8x8xf32>,
    } else {
    }
    %c0 = arith.constant 0 : index
    %c0_1 = arith.constant 0 : index
    %3 = vector.load %arg2[%c0, %c0_1] : memref<8x32xf32, #tpu.memory_space<vmem>>, vector<8x32xf32>
    %c0_2 = arith.constant 0 : index
    %c0_3 = arith.constant 0 : index
    %4 = vector.load %arg3[%c0_2, %c0_3] : memref<8x32xf32, #tpu.memory_space<vmem>>, vector<8x32xf32>
    %5 = arith.truncf %3 : vector<8x32xf32> to vector<8x32xbf16>
    %6 = arith.truncf %4 : vector<8x32xf32> to vector<8x32xbf16>
    %cst = arith.constant dense<0.000000e+00> : vector<8x8xf32>
    %7 = tpu.matmul %5, %6, %cst {dimension_numbers = #tpu.dot_dimension_numbers<[1], [1], [0], [0], [0, 0, 1, 0], [], []>} : vector<8x32xbf16>, vector<8x32xbf16>, vector<8x8xf32> -> vector<8x8xf32>
    %c0_4 = arith.constant 0 : index
    %c0_5 = arith.constant 0 : index
    %8 = vector.load %arg4[%c0_4, %c0_5] : memref<8x1xf32, #tpu.memory_space<vmem>>, vector<8x1xf32>
    %c0_6 = arith.constant 0 : index
    %c0_7 = arith.constant 0 : index
    %9 = vector.load %arg5[%c0_6, %c0_7] : memref<1x8xf32, #tpu.memory_space<vmem>>, vector<1x8xf32>
    %10 = vector.broadcast %8 : vector<8x1xf32> to vector<8x8xf32>
    %11 = vector.broadcast %9 : vector<1x8xf32> to vector<8x8xf32>
    %12 = arith.addf %10, %11 : vector<8x8xf32>
    %cst_8 = arith.constant 2.000000e+00 : f32
    %13 = vector.broadcast %cst_8 : f32 to vector<8x8xf32>
    %14 = arith.mulf %13, %7 : vector<8x8xf32>
    %15 = arith.subf %12, %14 : vector<8x8xf32>
    %cst_9 = arith.constant 0.000000e+00 : f32
    %16 = vector.broadcast %cst_9 : f32 to vector<8x8xf32>
    %17 = arith.maximumf %15, %16 : vector<8x8xf32>
    %18 = math.sqrt %17 : vector<8x8xf32>
    %cst_10 = arith.constant 1.000000e+00 : f32
    %19 = vector.broadcast %cst_10 : f32 to vector<8x8xf32>
    %20 = arith.subf %19, %18 : vector<8x8xf32>
    %cst_11 = arith.constant 0.000000e+00 : f32
    %21 = vector.broadcast %cst_11 : f32 to vector<8x8xf32>
    %22 = arith.maximumf %20, %21 : vector<8x8xf32>
    %23 = arith.mulf %22, %22 : vector<8x8xf32>
    %24 = arith.cmpi ne, %arg0, %arg1 : i32
    %25 = arith.extui %24 : i1 to i32
    %c0_i32_12 = arith.constant 0 : i32
    %26 = arith.cmpi ne, %25, %c0_i32_12 : i32
    scf.if %26 {
      %c0_16 = arith.constant 0 : index
      %c0_17 = arith.constant 0 : index
      %33 = vector.load %arg7[%c0_16, %c0_17] : memref<8x8xf32, #tpu.memory_space<vmem>>, vector<8x8xf32>
      %34 = arith.addf %33, %23 : vector<8x8xf32>
      %c0_18 = arith.constant 0 : index
      %c0_19 = arith.constant 0 : index
      %35 = vector.load %arg7[%c0_18, %c0_19] : memref<8x8xf32, #tpu.memory_space<vmem>>, vector<8x8xf32>
      tpu.vector_store %arg7[%c0_18, %c0_19], %34 {strides = array<i32>} : memref<8x8xf32, #tpu.memory_space<vmem>>, vector<8x8xf32>,
    } else {
    }
    %27 = arith.cmpi eq, %arg0, %arg1 : i32
    %28 = arith.extui %27 : i1 to i32
    %c0_i32_13 = arith.constant 0 : i32
    %29 = arith.cmpi ne, %28, %c0_i32_13 : i32
    scf.if %29 {
      %33 = arith.subf %3, %4 : vector<8x32xf32>
      %cst_16 = arith.constant 9.99999997E-7 : f32
      %34 = vector.broadcast %cst_16 : f32 to vector<8x32xf32>
      %35 = arith.addf %33, %34 : vector<8x32xf32>
      %36 = arith.mulf %35, %35 : vector<8x32xf32>
      %cst_17 = arith.constant dense<0.000000e+00> : vector<8xf32>
      %37 = vector.multi_reduction <add>, %36, %cst_17 [1] : vector<8x32xf32> to vector<8xf32>
      %38 = vector.shape_cast %37 : vector<8xf32> to vector<8x1xf32>
      %c8_i32 = arith.constant 8 : i32
      %39 = arith.muli %arg0, %c8_i32 : i32
      %40 = tpu.iota {dimensions = array<i32: 0>} : vector<8x1xi32>
      %41 = vector.broadcast %39 : i32 to vector<8x1xi32>
      %42 = arith.addi %41, %40 : vector<8x1xi32>
      %c4_i32 = arith.constant 4 : i32
      %43 = vector.broadcast %c4_i32 : i32 to vector<8x1xi32>
      %44 = arith.cmpi slt, %42, %43 : vector<8x1xi32>
      %cst_18 = arith.constant 0.000000e+00 : f32
      %45 = vector.broadcast %cst_18 : f32 to vector<8x1xf32>
      %46 = arith.select %44, %38, %45 : vector<8x1xi1>, vector<8x1xf32>
      %47 = tpu.iota {dimensions = array<i32: 0>} : vector<8x8xi32>
      %48 = tpu.iota {dimensions = array<i32: 1>} : vector<8x8xi32>
      %c0_19 = arith.constant 0 : index
      %c0_20 = arith.constant 0 : index
      %49 = vector.load %arg7[%c0_19, %c0_20] : memref<8x8xf32, #tpu.memory_space<vmem>>, vector<8x8xf32>
      %50 = arith.cmpi eq, %47, %48 : vector<8x8xi32>
      %51 = vector.shape_cast %46 : vector<8x1xf32> to vector<8x1xf32>
      %52 = vector.broadcast %51 : vector<8x1xf32> to vector<8x8xf32>
      %53 = arith.select %50, %52, %23 : vector<8x8xi1>, vector<8x8xf32>
      %54 = arith.addf %49, %53 : vector<8x8xf32>
      %c0_21 = arith.constant 0 : index
      %c0_22 = arith.constant 0 : index
      %55 = vector.load %arg7[%c0_21, %c0_22] : memref<8x8xf32, #tpu.memory_space<vmem>>, vector<8x8xf32>
      tpu.vector_store %arg7[%c0_21, %c0_22], %54 {strides = array<i32>} : memref<8x8xf32, #tpu.memory_space<vmem>>, vector<8x8xf32>,
    } else {
    }
    %c0_i32_14 = arith.constant 0 : i32
    %30 = arith.cmpi eq, %arg1, %c0_i32_14 : i32
    %31 = arith.extui %30 : i1 to i32
    %c0_i32_15 = arith.constant 0 : i32
    %32 = arith.cmpi ne, %31, %c0_i32_15 : i32
    scf.if %32 {
      %cst_16 = arith.constant 0.000000e+00 : f32
      %33 = vector.broadcast %cst_16 : f32 to vector<8x128xf32>
      %c0_17 = arith.constant 0 : index
      %c0_18 = arith.constant 0 : index
      %34 = vector.load %arg7[%c0_17, %c0_18] : memref<8x8xf32, #tpu.memory_space<vmem>>, vector<8x8xf32>
      %35 = vector.shape_cast %34 : vector<8x8xf32> to vector<1x8x8xf32>
      %cst_19 = arith.constant dense<0.000000e+00> : vector<1xf32>
      %36 = vector.multi_reduction <add>, %35, %cst_19 [1, 2] : vector<1x8x8xf32> to vector<1xf32>
      %37 = vector.shape_cast %36 : vector<1xf32> to vector<1x1x1xf32>
      %38 = vector.extract %37[0, 0, 0] : f32 from vector<1x1x1xf32>
      %39 = vector.broadcast %38 : f32 to vector<8x128xf32>
      %40 = arith.addf %33, %39 : vector<8x128xf32>
      %c0_20 = arith.constant 0 : index
      %c0_21 = arith.constant 0 : index
      %c0_22 = arith.constant 0 : index
      %41 = vector.load %arg6[%c0_20, %c0_21, %c0_22] : memref<1x8x128xf32, #tpu.memory_space<vmem>>, vector<1x8x128xf32>
      %42 = vector.shape_cast %41 : vector<1x8x128xf32> to vector<8x128xf32>
      %43 = vector.shape_cast %40 : vector<8x128xf32> to vector<1x8x128xf32>
      tpu.vector_store %arg6[%c0_20, %c0_21, %c0_22], %43 {strides = array<i32>} : memref<1x8x128xf32, #tpu.memory_space<vmem>>, vector<1x8x128xf32>,
    } else {
    }
    return
  }
  func.func @transform_0(%arg0: i32, %arg1: i32) -> (i32, i32) {
    %c0_i32 = arith.constant 0 : i32
    %c0_i32_0 = arith.constant 0 : i32
    return %arg0, %c0_i32 : i32, i32
  }
  func.func @transform_1(%arg0: i32, %arg1: i32) -> (i32, i32) {
    %c0_i32 = arith.constant 0 : i32
    %c0_i32_0 = arith.constant 0 : i32
    return %arg1, %c0_i32 : i32, i32
  }
  func.func @transform_2(%arg0: i32, %arg1: i32) -> (i32, i32) {
    %c0_i32 = arith.constant 0 : i32
    %c0_i32_0 = arith.constant 0 : i32
    return %arg0, %c0_i32 : i32, i32
  }
  func.func @transform_3(%arg0: i32, %arg1: i32) -> (i32, i32) {
    %c0_i32 = arith.constant 0 : i32
    %c0_i32_0 = arith.constant 0 : i32
    return %c0_i32, %arg1 : i32, i32
  }
  func.func @transform_4(%arg0: i32, %arg1: i32) -> (i32, i32, i32) {
    %c0_i32 = arith.constant 0 : i32
    %c0_i32_0 = arith.constant 0 : i32
    %c0_i32_1 = arith.constant 0 : i32
    return %arg0, %c0_i32, %c0_i32_0 : i32, i32, i32
  }
}

</mosaic_0001>

<llo_original>
// kernel: tpu_custom_call.1
$region0: #{tpu_custom_call.1}
  #allocation0 [shape = 'u32[]', space=smem, size = 0x4, offset = 0x4, fixed_abs, tag = 'smem constant byte address 0x4 - core index']
  #allocation1 [shape = 'u32[144,128]{1,0:T(1,128)}', space=vmem, size = 0x12000, scoped, tag = 'internal scratch']
  #allocation2 [shape = 'f32[8,8]{1,0:T(8,128)}', space=vmem, size = 0x1000, scoped, tag = 'scratch operand']
  %s0 = inlined_call_operand.vmem [shape: f32[8,32], index: 0, kind: input, shape index: {}]
  %s1 = inlined_call_operand.hbm [shape: f32[8,32], index: 1, kind: input, shape index: {}]
  %s2 = inlined_call_operand.vmem [shape: f32[8,1], index: 2, kind: input, shape index: {}]
  %s3 = inlined_call_operand.vmem [shape: f32[1,8], index: 3, kind: input, shape index: {}]
  %s4 = inlined_call_operand.hbm [shape: f32[1,8,128], index: 4, kind: output, shape index: {}]
  %s5 = sld [smem:[#allocation0]]
  $region46: #{tpu_custom_call.1} parent=0
    _
  %s7 = ssub.s32 1, %s5
  %s8 = scalar_select 0, %s7, %s5
  $region1: #{tpu_custom_call.1} parent=0
    #allocation3 [shape = 'u8[4096]{0}', space=vmem, size = 0x1000, scoped, tag = 'input window, operand 1, single buffered']
    #allocation4 [shape = 's32[1]{0}', space=sflag, size = 0x4, scoped, tag = 'scoped memory for tpu_custom_call.1']
    #allocation5 [shape = 's32[1]{0}', space=sflag, size = 0x4, scoped, tag = 'scoped memory for tpu_custom_call.1']
    #allocation6 [shape = 'u8[4096]{0}', space=vmem, size = 0x1000, scoped, tag = 'output window, operand 0, single buffered']
    %9 = vsyncpa [#allocation4], 0
    %10 = vsyncpa [#allocation5], 0
    // Predicated region
    $region2: #{tpu_custom_call.1} parent=1 // pred_check
      _
    $region3: #{tpu_custom_call.1} parent=1 // pred_check_branch
      %12 = sbr.rel (0) target = $region5
    $region4: #{tpu_custom_call.1} parent=1 // pred_region
      _
    $region5: #{tpu_custom_call.1} parent=1 // pred_fallthru
      _
    // Predicated region
    $region6: #{tpu_custom_call.1} parent=1 // pred_check
      _
    $region7: #{tpu_custom_call.1} parent=1 // pred_check_branch
      %14 = sbr.rel (0) target = $region9
    $region8: #{tpu_custom_call.1} parent=1 // pred_region
      %s16 = ssub.s32 128, 128
      %17 = vsyncadd [#allocation4], %s16
      %s19 = sshll.u32 [#allocation3], 4
      %s20 = int_to_ptr.vmem [resolvable:$true] %s19
      %22 = dma.hbm_to_vmem [thread:$0]  %s1, 128, %s20, [#allocation4]
    $region9: #{tpu_custom_call.1} parent=1 // pred_fallthru
      _
    // Predicated region
    $region10: #{tpu_custom_call.1} parent=1 // pred_check
      _
    $region11: #{tpu_custom_call.1} parent=1 // pred_check_branch
      %24 = sbr.rel (0) target = $region13
    $region12: #{tpu_custom_call.1} parent=1 // pred_region
      _
    $region13: #{tpu_custom_call.1} parent=1 // pred_fallthru
      _
    // Predicated region
    $region14: #{tpu_custom_call.1} parent=1 // pred_check
      _
    $region15: #{tpu_custom_call.1} parent=1 // pred_check_branch
      %26 = sbr.rel (0) target = $region17
    $region16: #{tpu_custom_call.1} parent=1 // pred_region
      _
    $region17: #{tpu_custom_call.1} parent=1 // pred_fallthru
      _
    // Predicated region
    $region18: #{tpu_custom_call.1} parent=1 // pred_check
      _
    $region19: #{tpu_custom_call.1} parent=1 // pred_check_branch
      %28 = sbr.rel (0) target = $region21
    $region20: #{tpu_custom_call.1} parent=1 // pred_region
      %29 = dma.done [#allocation4], 128
    $region21: #{tpu_custom_call.1} parent=1 // pred_fallthru
      _
    %p31 = scmp.eq.s32.totalorder 0, 0
    // Predicated region
    $region22: #{tpu_custom_call.1} parent=1 // pred_check
      %p32 = pneg %p31
    $region23: #{tpu_custom_call.1} parent=1 // pred_check_branch
      %34 = sbr.rel (%p32) target = $region25
    $region24: #{tpu_custom_call.1} parent=1 // pred_region
      %vm35 = vcmask 64512
      %36 = vst.msk [vmem:[#allocation2] sm:$0xff] %vm35, 0.0
    $region25: #{tpu_custom_call.1} parent=1 // pred_fallthru
      _
    %v37 = vld [vmem:[%s0] sm:$0xff]
    %v38 = vld [vmem:[#allocation3] sm:$0xff]
    %v39 = vpack.c.bf16 %v37, %v37
    %v40 = vpack.c.bf16 %v38, %v38
    %vm41 = vcmask 261120
    %v43 = vsel %vm41, %v39, 0
    %v46 = vsel %vm41, %v40, 0
    %48 = vmatprep.subr.bf16.mxu0 0
    %49 = vmatpush1.bf16.xpose.msra.mxu0 %v46
    %50 = vmatprep.subr.bf16.mxu0 0
    %51 = vmatpush1.bf16.xpose.msra.mxu0 0
    %52 = vmatprep.subr.bf16.mxu0 0
    %53 = vmatpush1.bf16.xpose.msra.mxu0 0
    %54 = vmatprep.subr.bf16.mxu0 0
    %55 = vmatpush1.bf16.xpose.msra.mxu0 0
    %56 = vmatprep.subr.bf16.mxu0 0
    %57 = vmatpush1.bf16.xpose.msra.mxu0 0
    %58 = vmatprep.subr.bf16.mxu0 0
    %59 = vmatpush1.bf16.xpose.msra.mxu0 0
    %60 = vmatprep.subr.bf16.mxu0 0
    %61 = vmatpush1.bf16.xpose.msra.mxu0 0
    %62 = vmatprep.subr.bf16.mxu0 0
    %63 = vmatpush1.bf16.xpose.msra.mxu0 0
    %64 = vmatprep.subr.bf16.mxu0 0
    %65 = vmatpush1.bf16.xpose.msra.mxu0 0
    %66 = vmatprep.subr.bf16.mxu0 0
    %67 = vmatpush1.bf16.xpose.msra.mxu0 0
    %68 = vmatprep.subr.bf16.mxu0 0
    %69 = vmatpush1.bf16.xpose.msra.mxu0 0
    %70 = vmatprep.subr.bf16.mxu0 0
    %71 = vmatpush1.bf16.xpose.msra.mxu0 0
    %72 = vmatprep.subr.bf16.mxu0 0
    %73 = vmatpush1.bf16.xpose.msra.mxu0 0
    %74 = vmatprep.subr.bf16.mxu0 0
    %75 = vmatpush1.bf16.xpose.msra.mxu0 0
    %76 = vmatprep.subr.bf16.mxu0 0
    %77 = vmatpush1.bf16.xpose.msra.mxu0 0
    %78 = vmatprep.subr.bf16.mxu0 0
    %79 = vmatpush1.bf16.xpose.msra.mxu0 0
    %80 = vmatprep.mubr.bf16.mxu0 0
    %81 = vmatmul.mubr.bf16.gmra.mrb[0].mxu0 %v43
    %v82 = vpop.f32.mrb[0].mxu0
    %v83 = vadd.f32 0.0, %v82
    %v84 = vpop.f32.mrb[0].mxu0
    %v85 = vpop.f32.mrb[0].mxu0
    %v86 = vpop.f32.mrb[0].mxu0
    %87 = vdwg.mxu0
    %v88 = vld [vmem:[%s2] sm:$0xff]
    %v89 = vld [vmem:[%s3] sm:$0x1]
    %91 = vset.pattern.permute.xlu0 0
    %92 = vperm.xlu0 %91, %v88
    %v93 = vpop.permute.xlu0 %92
    %v96 = vlaneseq
    %v97 = vshrl.u32 %v96, 7
    %v98 = vsub.s32 0, %v97
    %v99 = vrot.slane %v89, %v98
    %v101 = vadd.f32 %v93, %v99
    %v102 = vmul.f32 %v83, 2.0
    %v103 = vsub.f32 %v101, %v102
    %v104 = vmax.f32 %v103, 0.0
    %v105 = vrsqrt.pop %v104
    %v106 = vmul.f32 %v104, %v105
    %vm107 = vcmp.eq.f32.partialorder %v104, inf
    %v108 = vsel %vm107, %v104, %v106
    %vm109 = vcmp.eq.f32.partialorder %v104, 0.0
    %v110 = vand.u32 %v104, 2147483648
    %v111 = vsel %vm109, %v110, %v108
    %v112 = vsub.f32 1.0, %v111
    %v113 = vmax.f32 %v112, 0.0
    %v114 = vmul.f32 %v113, %v113
    %p115 = scmp.ne.s32.totalorder 0, 0
    // Predicated region
    $region26: #{tpu_custom_call.1} parent=1 // pred_check
      %p116 = pneg %p115
    $region27: #{tpu_custom_call.1} parent=1 // pred_check_branch
      %118 = sbr.rel (%p116) target = $region29
    $region28: #{tpu_custom_call.1} parent=1 // pred_region
      %v119 = vld [vmem:[#allocation2] sm:$0xff]
      %v120 = vadd.f32 %v119, %v114
      %vm121 = vcmask 64512
      %122 = vst.msk [vmem:[#allocation2] sm:$0xff] %vm121, %v120
    $region29: #{tpu_custom_call.1} parent=1 // pred_fallthru
      _
    %p123 = scmp.eq.s32.totalorder 0, 0
    // Predicated region
    $region30: #{tpu_custom_call.1} parent=1 // pred_check
      %p124 = pneg %p123
    $region31: #{tpu_custom_call.1} parent=1 // pred_check_branch
      %126 = sbr.rel (%p124) target = $region33
    $region32: #{tpu_custom_call.1} parent=1 // pred_region
      %v127 = vsub.f32 %v37, %v38
      %v128 = vadd.f32 %v127, 1e-06
      %v129 = vmul.f32 %v128, %v128
      %v130 = vsel %vm41, %v129, 0.0
      %131 = vadd.xlane.f32.xlu0 %v130
      %v132 = vpop.xlane.xlu0 %131
      %s133 = smul.u32 0, 8
      %v134 = vlaneseq
      %v135 = vshrl.u32 %v134, 7
      %v136 = vstv %s133
      %v137 = vadd.s32 %v136, %v135
      %vm138 = vcmp.lt.s32.totalorder %v137, 4
      %v139 = vsel %vm138, %v132, 0.0
      %v140 = vlaneseq
      %v141 = vand.u32 %v140, 127
      %v142 = vld [vmem:[#allocation2] sm:$0xff]
      %vm143 = vcmp.eq.s32.totalorder %v135, %v141
      %v144 = vsel %vm143, %v139, %v114
      %v145 = vadd.f32 %v142, %v144
      %vm146 = vcmask 64512
      %147 = vst.msk [vmem:[#allocation2] sm:$0xff] %vm146, %v145
    $region33: #{tpu_custom_call.1} parent=1 // pred_fallthru
      _
    // Predicated region
    $region34: #{tpu_custom_call.1} parent=1 // pred_check
      %p148 = pneg %p31
    $region35: #{tpu_custom_call.1} parent=1 // pred_check_branch
      %150 = sbr.rel (%p148) target = $region37
    $region36: #{tpu_custom_call.1} parent=1 // pred_region
      %v151 = vld [vmem:[#allocation2] sm:$0xff]
      %vm152 = vcmask 64512
      %v153 = vsel %vm152, %v151, 0.0
      %154 = vadd.xlane.f32.xlu0 %v153
      %v155 = vpop.xlane.xlu0 %154
      %v156 = vrot.slane %v155, 4
      %v157 = vadd.f32 %v155, %v156
      %v158 = vrot.slane %v157, 2
      %v159 = vadd.f32 %v157, %v158
      %v160 = vrot.slane %v159, 1
      %v161 = vadd.f32 %v159, %v160
      %s162 = vtos %v161
      %v163 = vstv %s162
      %v164 = vadd.f32 %v163, 0.0
      %165 = vst [vmem:[#allocation6] sm:$0xff] %v164
    $region37: #{tpu_custom_call.1} parent=1 // pred_fallthru
      _
    // Predicated region
    $region38: #{tpu_custom_call.1} parent=1 // pred_check
      _
    $region39: #{tpu_custom_call.1} parent=1 // pred_check_branch
      %167 = sbr.rel (0) target = $region41
    $region40: #{tpu_custom_call.1} parent=1 // pred_region
      %s169 = ssub.s32 128, 128
      %170 = vsyncadd [#allocation5], %s169
      %s172 = sshll.u32 [#allocation6], 4
      %s173 = int_to_ptr.vmem [resolvable:$true] %s172
      %175 = dma.vmem_to_hbm [thread:$0]  %s173, 128, %s4, [#allocation5]
    $region41: #{tpu_custom_call.1} parent=1 // pred_fallthru
      _
    // Predicated region
    $region42: #{tpu_custom_call.1} parent=1 // pred_check
      _
    $region43: #{tpu_custom_call.1} parent=1 // pred_check_branch
      %177 = sbr.rel (0) target = $region45
    $region44: #{tpu_custom_call.1} parent=1 // pred_region
      %178 = dma.done [#allocation5], 128
    $region45: #{tpu_custom_call.1} parent=1 // pred_fallthru
      _
    %179 = vsyncpa [#allocation4], 1
    %180 = vsyncpa [#allocation5], 1

</llo_original>
